<compile_context>
chip_gen: v5e
topology: v5e:2x2
jax: 0.10.0
libtpu: 0.0.40
codegen_flags: <defaults>
</compile_context>

<pallas_src>
import jax
import jax.numpy as jnp
import numpy as np
from jax.experimental import pallas as pl
from jax.experimental.pallas import tpu as pltpu


def _round_up(x, m):
    return ((x + m - 1) // m) * m


def _cls_reducer_kernel(x_ref, wm_ref, bm_ref, wl_ref, bl_ref,
                        mean_ref, logvar_ref):
    """Both Conv1D heads on the CLS rows: one MXU dot per head, f32 accumulate."""
    x = x_ref[...]
    mean = (jnp.dot(x, wm_ref[...], preferred_element_type=jnp.float32)
            + bm_ref[...].astype(jnp.float32))
    logvar = (jnp.dot(x, wl_ref[...], preferred_element_type=jnp.float32)
              + bl_ref[...].astype(jnp.float32))
    mean_ref[...] = mean.astype(mean_ref.dtype)
    logvar_ref[...] = logvar.astype(logvar_ref.dtype)


def cls_reducer(hidden_states, params, *, tb=None, out_dtype=None,
                gather_in_kernel=True):
    """hidden_states: (B, L, E). Returns (mean, logvar), each (B, E)."""
    B, L, E = hidden_states.shape
    wm, wl = params["wm"], params["wl"]
    bm = jnp.reshape(params["bm"], (1, E))
    bl = jnp.reshape(params["bl"], (1, E))
    if out_dtype is None:
        out_dtype = hidden_states.dtype

    # Batch tile: big enough to amortize per-grid-step pipeline overhead and
    # feed the 256-wide MXUs (v6e/v7x); >= 2 grid steps when B allows it so
    # the "parallel" batch axis can shard across both v7x TensorCores.
    if tb is None:
        if B <= 8:
            tb = B
        else:
            tb = min(256, _round_up(pl.cdiv(B, 2), 8))
    grid = (pl.cdiv(B, tb),)

    # VMEM budget: double-buffered blocks (inputs/outputs) + resident weights.
    itm_x = hidden_states.dtype.itemsize
    itm_w = wm.dtype.itemsize
    itm_o = np.dtype(out_dtype).itemsize
    block_bytes = (tb * E * itm_x                 # CLS rows
                   + 2 * (E * E + E) * itm_w      # both heads' weight + bias
                   + 2 * tb * E * itm_o)          # mean + logvar blocks
    vmem_limit = int(min(max(2 * block_bytes + (4 << 20), 32 << 20), 100 << 20))

    cost = pl.CostEstimate(
        flops=2 * B * E * (2 * E),
        transcendentals=0,
        bytes_accessed=int(B * E * itm_x + 2 * (E * E + E) * itm_w
                           + 2 * B * E * itm_o),
    )

    def _call(x_in, x_spec):
        return pl.pallas_call(
            _cls_reducer_kernel,
            out_shape=(jax.ShapeDtypeStruct((B, E), out_dtype),
                       jax.ShapeDtypeStruct((B, E), out_dtype)),
            grid_spec=pltpu.PrefetchScalarGridSpec(
                num_scalar_prefetch=0,
                grid=grid,
                in_specs=[
                    x_spec,                                    # CLS rows
                    pl.BlockSpec((E, E), lambda i: (0, 0)),    # mean head W
                    pl.BlockSpec((1, E), lambda i: (0, 0)),    # mean head b
                    pl.BlockSpec((E, E), lambda i: (0, 0)),    # logvar head W
                    pl.BlockSpec((1, E), lambda i: (0, 0)),    # logvar head b
                ],
                out_specs=[
                    pl.BlockSpec((tb, E), lambda i: (i, 0)),   # mean
                    pl.BlockSpec((tb, E), lambda i: (i, 0)),   # logvar
                ],
            ),
            compiler_params=pltpu.CompilerParams(
                dimension_semantics=("parallel",),
                vmem_limit_bytes=vmem_limit),
            cost_estimate=cost,
        )(x_in, wm, bm, wl, bl)

    if gather_in_kernel:
        # CLS gather inside the kernel: the squeezed sequence dim (block index
        # 0 = CLS position) makes Pallas DMA only the B*E CLS elements
        # directly out of the (B, L, E) tensor.
        try:
            return _call(hidden_states,
                         pl.BlockSpec((tb, None, E), lambda i: (i, 0, 0)))
        except Exception:
            # Fallback for builds that reject a size-1 second-minor input
            # block: gather the CLS rows with a cheap XLA slice instead.
            pass
    r = hidden_states[:, 0, :]
    return _call(r, pl.BlockSpec((tb, E), lambda i: (i, 0)))


def _reference(hidden_states, params):
    """Pure-JAX reference matching the PyTorch forward."""
    r = hidden_states[:, 0]
    mean = r @ params["wm"] + params["bm"]
    logvar = r @ params["wl"] + params["bl"]
    return mean, logvar


def _make_case(key, B, L, E):
    k_x, k_wm, k_bm, k_wl, k_bl = jax.random.split(key, 5)
    hidden_states = jax.random.normal(k_x, (B, L, E), dtype=jnp.float32)
    params = {
        # GPT-2 Conv1D(embed_dim, embed_dim): weight stored (nx, nf) = (E, E).
        "wm": jax.random.normal(k_wm, (E, E), dtype=jnp.float32) * 0.02,
        "bm": jax.random.normal(k_bm, (E,), dtype=jnp.float32) * 0.02,
        "wl": jax.random.normal(k_wl, (E, E), dtype=jnp.float32) * 0.02,
        "bl": jax.random.normal(k_bl, (E,), dtype=jnp.float32) * 0.02,
    }
    return hidden_states, params


if __name__ == "__main__":
    key = jax.random.PRNGKey(0)
    k1, k2 = jax.random.split(key)

    # Main case: E a multiple of 128 -> lane-dense dual-output fast path.
    hs, params = _make_case(k1, B=4, L=8, E=128)
    mean, logvar = cls_reducer(hs, params)
    jax.block_until_ready((mean, logvar))
    ref_mean, ref_logvar = _reference(hs, params)
    np.testing.assert_allclose(np.asarray(mean), np.asarray(ref_mean),
                               rtol=1e-5, atol=2e-5)
    np.testing.assert_allclose(np.asarray(logvar), np.asarray(ref_logvar),
                               rtol=1e-5, atol=2e-5)

    # Small-E case (E not a multiple of 128): same kernel, full-width blocks.
    hs2, params2 = _make_case(k2, B=2, L=8, E=32)
    mean2, logvar2 = cls_reducer(hs2, params2)
    jax.block_until_ready((mean2, logvar2))
    ref_mean2, ref_logvar2 = _reference(hs2, params2)
    np.testing.assert_allclose(np.asarray(mean2), np.asarray(ref_mean2),
                               rtol=1e-5, atol=2e-5)
    np.testing.assert_allclose(np.asarray(logvar2), np.asarray(ref_logvar2),
                               rtol=1e-5, atol=2e-5)

    print("KERNEL_OK")
</pallas_src>

<mosaic_0001>
module attributes {stable_mosaic.version = 11 : i64} {
  func.func @_cls_reducer_kernel(%arg0: i32, %arg1: memref<4x128xf32, #tpu.memory_space<vmem>>, %arg2: memref<128x128xf32, #tpu.memory_space<vmem>>, %arg3: memref<1x128xf32, #tpu.memory_space<vmem>>, %arg4: memref<128x128xf32, #tpu.memory_space<vmem>>, %arg5: memref<1x128xf32, #tpu.memory_space<vmem>>, %arg6: memref<4x128xf32, #tpu.memory_space<vmem>>, %arg7: memref<4x128xf32, #tpu.memory_space<vmem>>) attributes {dimension_semantics = [#tpu.dimension_semantics<parallel>], iteration_bounds = array<i64: 1>, scalar_prefetch = 0 : i64, scratch_operands = 0 : i64, tpu.core_type = #tpu.core_type<tc>, window_params = [{transform_indices = @transform_0, window_bounds = array<i64: 4, 128>}, {pipeline_mode = #tpu.pipeline_mode<synchronous>, transform_indices = @transform_1, window_bounds = array<i64: 128, 128>}, {pipeline_mode = #tpu.pipeline_mode<synchronous>, transform_indices = @transform_2, window_bounds = array<i64: 1, 128>}, {pipeline_mode = #tpu.pipeline_mode<synchronous>, transform_indices = @transform_3, window_bounds = array<i64: 128, 128>}, {pipeline_mode = #tpu.pipeline_mode<synchronous>, transform_indices = @transform_4, window_bounds = array<i64: 1, 128>}, {transform_indices = @transform_5, window_bounds = array<i64: 4, 128>}, {transform_indices = @transform_6, window_bounds = array<i64: 4, 128>}]} {
    %c0 = arith.constant 0 : index
    %c0_0 = arith.constant 0 : index
    %0 = vector.load %arg1[%c0, %c0_0] : memref<4x128xf32, #tpu.memory_space<vmem>>, vector<4x128xf32>
    %c0_1 = arith.constant 0 : index
    %c0_2 = arith.constant 0 : index
    %1 = vector.load %arg2[%c0_1, %c0_2] : memref<128x128xf32, #tpu.memory_space<vmem>>, vector<128x128xf32>
    %cst = arith.constant dense<0.000000e+00> : vector<4x128xf32>
    %2 = tpu.matmul %0, %1, %cst {dimension_numbers = #tpu.dot_dimension_numbers<[1], [0], [0], [1], [0, 0, 1, 1], [], []>} : vector<4x128xf32>, vector<128x128xf32>, vector<4x128xf32> -> vector<4x128xf32>
    %c0_3 = arith.constant 0 : index
    %c0_4 = arith.constant 0 : index
    %3 = vector.load %arg3[%c0_3, %c0_4] : memref<1x128xf32, #tpu.memory_space<vmem>>, vector<1x128xf32>
    %4 = vector.broadcast %3 : vector<1x128xf32> to vector<4x128xf32>
    %5 = arith.addf %2, %4 : vector<4x128xf32>
    %c0_5 = arith.constant 0 : index
    %c0_6 = arith.constant 0 : index
    %6 = vector.load %arg4[%c0_5, %c0_6] : memref<128x128xf32, #tpu.memory_space<vmem>>, vector<128x128xf32>
    %cst_7 = arith.constant dense<0.000000e+00> : vector<4x128xf32>
    %7 = tpu.matmul %0, %6, %cst_7 {dimension_numbers = #tpu.dot_dimension_numbers<[1], [0], [0], [1], [0, 0, 1, 1], [], []>} : vector<4x128xf32>, vector<128x128xf32>, vector<4x128xf32> -> vector<4x128xf32>
    %c0_8 = arith.constant 0 : index
    %c0_9 = arith.constant 0 : index
    %8 = vector.load %arg5[%c0_8, %c0_9] : memref<1x128xf32, #tpu.memory_space<vmem>>, vector<1x128xf32>
    %9 = vector.broadcast %8 : vector<1x128xf32> to vector<4x128xf32>
    %10 = arith.addf %7, %9 : vector<4x128xf32>
    %c0_10 = arith.constant 0 : index
    %c0_11 = arith.constant 0 : index
    %11 = vector.load %arg6[%c0_10, %c0_11] : memref<4x128xf32, #tpu.memory_space<vmem>>, vector<4x128xf32>
    tpu.vector_store %arg6[%c0_10, %c0_11], %5 {strides = array<i32>} : memref<4x128xf32, #tpu.memory_space<vmem>>, vector<4x128xf32>,
    %c0_12 = arith.constant 0 : index
    %c0_13 = arith.constant 0 : index
    %12 = vector.load %arg7[%c0_12, %c0_13] : memref<4x128xf32, #tpu.memory_space<vmem>>, vector<4x128xf32>
    tpu.vector_store %arg7[%c0_12, %c0_13], %10 {strides = array<i32>} : memref<4x128xf32, #tpu.memory_space<vmem>>, vector<4x128xf32>,
    return
  }
  func.func @transform_0(%arg0: i32) -> (i32, i32) {
    %c0_i32 = arith.constant 0 : i32
    %c0_i32_0 = arith.constant 0 : i32
    return %arg0, %c0_i32 : i32, i32
  }
  func.func @transform_1(%arg0: i32) -> (i32, i32) {
    %c0_i32 = arith.constant 0 : i32
    %c0_i32_0 = arith.constant 0 : i32
    %c0_i32_1 = arith.constant 0 : i32
    return %c0_i32, %c0_i32_0 : i32, i32
  }
  func.func @transform_2(%arg0: i32) -> (i32, i32) {
    %c0_i32 = arith.constant 0 : i32
    %c0_i32_0 = arith.constant 0 : i32
    %c0_i32_1 = arith.constant 0 : i32
    return %c0_i32, %c0_i32_0 : i32, i32
  }
  func.func @transform_3(%arg0: i32) -> (i32, i32) {
    %c0_i32 = arith.constant 0 : i32
    %c0_i32_0 = arith.constant 0 : i32
    %c0_i32_1 = arith.constant 0 : i32
    return %c0_i32, %c0_i32_0 : i32, i32
  }
  func.func @transform_4(%arg0: i32) -> (i32, i32) {
    %c0_i32 = arith.constant 0 : i32
    %c0_i32_0 = arith.constant 0 : i32
    %c0_i32_1 = arith.constant 0 : i32
    return %c0_i32, %c0_i32_0 : i32, i32
  }
  func.func @transform_5(%arg0: i32) -> (i32, i32) {
    %c0_i32 = arith.constant 0 : i32
    %c0_i32_0 = arith.constant 0 : i32
    return %arg0, %c0_i32 : i32, i32
  }
  func.func @transform_6(%arg0: i32) -> (i32, i32) {
    %c0_i32 = arith.constant 0 : i32
    %c0_i32_0 = arith.constant 0 : i32
    return %arg0, %c0_i32 : i32, i32
  }
}

</mosaic_0001>

<llo_original>
// kernel: tpu_custom_call.1
$region0: #{tpu_custom_call.1}
  #allocation0 [shape = 'u32[]', space=smem, size = 0x4, offset = 0x4, fixed_abs, tag = 'smem constant byte address 0x4 - core index']
  #allocation1 [shape = 'u32[72,128]{1,0:T(1,128)}', space=vmem, size = 0x9000, scoped, tag = 'internal scratch']
  %s0 = inlined_call_operand.hbm [shape: f32[4,128], index: 0, kind: input, shape index: {}]
  %s1 = inlined_call_operand.hbm [shape: f32[128,128], index: 1, kind: input, shape index: {}]
  %s2 = inlined_call_operand.vmem [shape: f32[1,128], index: 2, kind: input, shape index: {}]
  %s3 = inlined_call_operand.hbm [shape: f32[128,128], index: 3, kind: input, shape index: {}]
  %s4 = inlined_call_operand.vmem [shape: f32[1,128], index: 4, kind: input, shape index: {}]
  %s5 = inlined_call_operand.hbm [shape: f32[4,128], index: 5, kind: output, shape index: {0}]
  %s6 = inlined_call_operand.hbm [shape: f32[4,128], index: 6, kind: output, shape index: {1}]
  %7 = xla_tuple %s5, %s6
  %s8 = sld [smem:[#allocation0]]
  $region50: #{tpu_custom_call.1} parent=0
    _
  %s10 = ssub.s32 1, %s8
  %s11 = scalar_select 0, %s10, %s8
  $region1: #{tpu_custom_call.1} parent=0
    #allocation2 [shape = 'u8[2048]{0}', space=vmem, size = 0x800, scoped, tag = 'input window, operand 0, single buffered']
    #allocation3 [shape = 's32[1]{0}', space=sflag, size = 0x4, scoped, tag = 'scoped memory for tpu_custom_call.1']
    #allocation4 [shape = 's32[1]{0}', space=sflag, size = 0x4, scoped, tag = 'scoped memory for tpu_custom_call.1']
    #allocation5 [shape = 'u8[65536]{0}', space=vmem, size = 0x10000, scoped, tag = 'input window, operand 1, single buffered']
    #allocation6 [shape = 's32[1]{0}', space=sflag, size = 0x4, scoped, tag = 'scoped memory for tpu_custom_call.1']
    #allocation7 [shape = 'u8[65536]{0}', space=vmem, size = 0x10000, scoped, tag = 'input window, operand 3, single buffered']
    #allocation8 [shape = 'u8[2048]{0}', space=vmem, size = 0x800, scoped, tag = 'output window, operand 0, single buffered']
    #allocation9 [shape = 'u8[2048]{0}', space=vmem, size = 0x800, scoped, tag = 'output window, operand 1, single buffered']
    #allocation10 [shape = 's32[1]{0}', space=sflag, size = 0x4, scoped, tag = 'scoped memory for tpu_custom_call.1']
    %12 = vsyncpa [#allocation3], 0
    %13 = vsyncpa [#allocation6], 0
    %14 = vsyncpa [#allocation4], 0
    %15 = vsyncpa [#allocation10], 0
    // Predicated region
    $region2: #{tpu_custom_call.1} parent=1 // pred_check
      _
    $region3: #{tpu_custom_call.1} parent=1 // pred_check_branch
      %17 = sbr.rel (0) target = $region5
    $region4: #{tpu_custom_call.1} parent=1 // pred_region
      %19 = vsyncadd [#allocation3], 0
      %s21 = sshll.u32 %s0, 4
      %s22 = int_to_ptr.hbm [resolvable:$true] %s21
      %s23 = sshll.u32 [#allocation2], 4
      %s24 = int_to_ptr.vmem [resolvable:$true] %s23
      %26 = dma.hbm_to_vmem [thread:$0]  %s22, 64, %s24, [#allocation3]
    $region5: #{tpu_custom_call.1} parent=1 // pred_fallthru
      _
    // Predicated region
    $region6: #{tpu_custom_call.1} parent=1 // pred_check
      _
    $region7: #{tpu_custom_call.1} parent=1 // pred_check_branch
      %28 = sbr.rel (0) target = $region9
    $region8: #{tpu_custom_call.1} parent=1 // pred_region
      %30 = vsyncadd [#allocation6], 0
      %s31 = sshll.u32 %s1, 4
      %s32 = int_to_ptr.hbm [resolvable:$true] %s31
      %s33 = sshll.u32 [#allocation5], 4
      %s34 = int_to_ptr.vmem [resolvable:$true] %s33
      %39 = dma.hbm_to_vmem [thread:$0]  %s32, 2048, %s34, [#allocation6], 128, 128, 8
    $region9: #{tpu_custom_call.1} parent=1 // pred_fallthru
      _
    // Predicated region
    $region10: #{tpu_custom_call.1} parent=1 // pred_check
      _
    $region11: #{tpu_custom_call.1} parent=1 // pred_check_branch
      %41 = sbr.rel (0) target = $region13
    $region12: #{tpu_custom_call.1} parent=1 // pred_region
      _
    $region13: #{tpu_custom_call.1} parent=1 // pred_fallthru
      _
    // Predicated region
    $region14: #{tpu_custom_call.1} parent=1 // pred_check
      _
    $region15: #{tpu_custom_call.1} parent=1 // pred_check_branch
      %43 = sbr.rel (0) target = $region17
    $region16: #{tpu_custom_call.1} parent=1 // pred_region
      %45 = vsyncadd [#allocation6], 0
      %s46 = sshll.u32 %s3, 4
      %s47 = int_to_ptr.hbm [resolvable:$true] %s46
      %s48 = sshll.u32 [#allocation7], 4
      %s49 = int_to_ptr.vmem [resolvable:$true] %s48
      %54 = dma.hbm_to_vmem [thread:$0]  %s47, 2048, %s49, [#allocation6], 128, 128, 8
    $region17: #{tpu_custom_call.1} parent=1 // pred_fallthru
      _
    // Predicated region
    $region18: #{tpu_custom_call.1} parent=1 // pred_check
      _
    $region19: #{tpu_custom_call.1} parent=1 // pred_check_branch
      %56 = sbr.rel (0) target = $region21
    $region20: #{tpu_custom_call.1} parent=1 // pred_region
      _
    $region21: #{tpu_custom_call.1} parent=1 // pred_fallthru
      _
    // Predicated region
    $region22: #{tpu_custom_call.1} parent=1 // pred_check
      _
    $region23: #{tpu_custom_call.1} parent=1 // pred_check_branch
      %58 = sbr.rel (0) target = $region25
    $region24: #{tpu_custom_call.1} parent=1 // pred_region
      %60 = dma.done [#allocation3], 64
    $region25: #{tpu_custom_call.1} parent=1 // pred_fallthru
      _
    // Predicated region
    $region26: #{tpu_custom_call.1} parent=1 // pred_check
      _
    $region27: #{tpu_custom_call.1} parent=1 // pred_check_branch
      %62 = sbr.rel (0) target = $region29
    $region28: #{tpu_custom_call.1} parent=1 // pred_region
      %64 = dma.done [#allocation6], 2048
    $region29: #{tpu_custom_call.1} parent=1 // pred_fallthru
      _
    // Predicated region
    $region30: #{tpu_custom_call.1} parent=1 // pred_check
      _
    $region31: #{tpu_custom_call.1} parent=1 // pred_check_branch
      %66 = sbr.rel (0) target = $region33
    $region32: #{tpu_custom_call.1} parent=1 // pred_region
      %68 = dma.done [#allocation6], 2048
    $region33: #{tpu_custom_call.1} parent=1 // pred_fallthru
      _
    %v69 = vld [vmem:[#allocation2] sm:$0xf]
    %v70 = vld [vmem:[#allocation5] sm:$0xff]
    %v71 = vld [vmem:[#allocation5 + $0x8] sm:$0xff]
    %v72 = vld [vmem:[#allocation5 + $0x10] sm:$0xff]
    %v73 = vld [vmem:[#allocation5 + $0x18] sm:$0xff]
    %v74 = vld [vmem:[#allocation5 + $0x20] sm:$0xff]
    %v75 = vld [vmem:[#allocation5 + $0x28] sm:$0xff]
    %v76 = vld [vmem:[#allocation5 + $0x30] sm:$0xff]
    %v77 = vld [vmem:[#allocation5 + $0x38] sm:$0xff]
    %v78 = vld [vmem:[#allocation5 + $0x40] sm:$0xff]
    %v79 = vld [vmem:[#allocation5 + $0x48] sm:$0xff]
    %v80 = vld [vmem:[#allocation5 + $0x50] sm:$0xff]
    %v81 = vld [vmem:[#allocation5 + $0x58] sm:$0xff]
    %v82 = vld [vmem:[#allocation5 + $0x60] sm:$0xff]
    %v83 = vld [vmem:[#allocation5 + $0x68] sm:$0xff]
    %v84 = vld [vmem:[#allocation5 + $0x70] sm:$0xff]
    %v85 = vld [vmem:[#allocation5 + $0x78] sm:$0xff]
    %v86 = vld [vmem:[%s2] sm:$0x1]
    %v88 = vperm.slane %v86, 0
    %90 = vmatpush.msra.mxu0 %v85
    %91 = vmatpush.msra.mxu0 %v84
    %92 = vmatpush.msra.mxu0 %v83
    %93 = vmatpush.msra.mxu0 %v82
    %94 = vmatpush.msra.mxu0 %v81
    %95 = vmatpush.msra.mxu0 %v80
    %96 = vmatpush.msra.mxu0 %v79
    %97 = vmatpush.msra.mxu0 %v78
    %98 = vmatpush.msra.mxu0 %v77
    %99 = vmatpush.msra.mxu0 %v76
    %100 = vmatpush.msra.mxu0 %v75
    %101 = vmatpush.msra.mxu0 %v74
    %102 = vmatpush.msra.mxu0 %v73
    %103 = vmatpush.msra.mxu0 %v72
    %104 = vmatpush.msra.mxu0 %v71
    %105 = vmatpush.msra.mxu0 %v70
    %106 = vmatmul.f32.gmra.mxu0 %v69
    %v107 = vpop.f32.mrf.mxu0
    %v108 = vadd.f32 %v88, %v107
    %109 = vdwg.mxu0
    %v110 = vld [vmem:[#allocation7] sm:$0xff]
    %v111 = vld [vmem:[#allocation7 + $0x8] sm:$0xff]
    %v112 = vld [vmem:[#allocation7 + $0x10] sm:$0xff]
    %v113 = vld [vmem:[#allocation7 + $0x18] sm:$0xff]
    %v114 = vld [vmem:[#allocation7 + $0x20] sm:$0xff]
    %v115 = vld [vmem:[#allocation7 + $0x28] sm:$0xff]
    %v116 = vld [vmem:[#allocation7 + $0x30] sm:$0xff]
    %v117 = vld [vmem:[#allocation7 + $0x38] sm:$0xff]
    %v118 = vld [vmem:[#allocation7 + $0x40] sm:$0xff]
    %v119 = vld [vmem:[#allocation7 + $0x48] sm:$0xff]
    %v120 = vld [vmem:[#allocation7 + $0x50] sm:$0xff]
    %v121 = vld [vmem:[#allocation7 + $0x58] sm:$0xff]
    %v122 = vld [vmem:[#allocation7 + $0x60] sm:$0xff]
    %v123 = vld [vmem:[#allocation7 + $0x68] sm:$0xff]
    %v124 = vld [vmem:[#allocation7 + $0x70] sm:$0xff]
    %v125 = vld [vmem:[#allocation7 + $0x78] sm:$0xff]
    %v126 = vld [vmem:[%s4] sm:$0x1]
    %v128 = vperm.slane %v126, 0
    %130 = vmatpush.msra.mxu0 %v125
    %131 = vmatpush.msra.mxu0 %v124
    %132 = vmatpush.msra.mxu0 %v123
    %133 = vmatpush.msra.mxu0 %v122
    %134 = vmatpush.msra.mxu0 %v121
    %135 = vmatpush.msra.mxu0 %v120
    %136 = vmatpush.msra.mxu0 %v119
    %137 = vmatpush.msra.mxu0 %v118
    %138 = vmatpush.msra.mxu0 %v117
    %139 = vmatpush.msra.mxu0 %v116
    %140 = vmatpush.msra.mxu0 %v115
    %141 = vmatpush.msra.mxu0 %v114
    %142 = vmatpush.msra.mxu0 %v113
    %143 = vmatpush.msra.mxu0 %v112
    %144 = vmatpush.msra.mxu0 %v111
    %145 = vmatpush.msra.mxu0 %v110
    %146 = vmatmul.f32.gmra.mxu0 %v69
    %v147 = vpop.f32.mrf.mxu0
    %v148 = vadd.f32 %v128, %v147
    %149 = vdwg.mxu0
    %150 = vst [vmem:[#allocation8] sm:$0xf] %v108
    %151 = vst [vmem:[#allocation9] sm:$0xf] %v148
    // Predicated region
    $region34: #{tpu_custom_call.1} parent=1 // pred_check
      _
    $region35: #{tpu_custom_call.1} parent=1 // pred_check_branch
      %153 = sbr.rel (0) target = $region37
    $region36: #{tpu_custom_call.1} parent=1 // pred_region
      %155 = vsyncadd [#allocation4], 0
      %s157 = sshll.u32 [#allocation8], 4
      %s158 = int_to_ptr.vmem [resolvable:$true] %s157
      %s159 = sshll.u32 %s5, 4
      %s160 = int_to_ptr.hbm [resolvable:$true] %s159
      %162 = dma.vmem_to_hbm [thread:$0]  %s158, 64, %s160, [#allocation4]
    $region37: #{tpu_custom_call.1} parent=1 // pred_fallthru
      _
    // Predicated region
    $region38: #{tpu_custom_call.1} parent=1 // pred_check
      _
    $region39: #{tpu_custom_call.1} parent=1 // pred_check_branch
      %164 = sbr.rel (0) target = $region41
    $region40: #{tpu_custom_call.1} parent=1 // pred_region
      %166 = vsyncadd [#allocation10], 0
      %s168 = sshll.u32 [#allocation9], 4
      %s169 = int_to_ptr.vmem [resolvable:$true] %s168
      %s170 = sshll.u32 %s6, 4
      %s171 = int_to_ptr.hbm [resolvable:$true] %s170
      %173 = dma.vmem_to_hbm [thread:$0]  %s169, 64, %s171, [#allocation10]
    $region41: #{tpu_custom_call.1} parent=1 // pred_fallthru
      _
    // Predicated region
    $region42: #{tpu_custom_call.1} parent=1 // pred_check
      _
    $region43: #{tpu_custom_call.1} parent=1 // pred_check_branch
      %175 = sbr.rel (0) target = $region45
    $region44: #{tpu_custom_call.1} parent=1 // pred_region
      %177 = dma.done [#allocation4], 64
    $region45: #{tpu_custom_call.1} parent=1 // pred_fallthru
      _
    // Predicated region
    $region46: #{tpu_custom_call.1} parent=1 // pred_check
      _
    $region47: #{tpu_custom_call.1} parent=1 // pred_check_branch
      %179 = sbr.rel (0) target = $region49
    $region48: #{tpu_custom_call.1} parent=1 // pred_region
      %181 = dma.done [#allocation10], 64
    $region49: #{tpu_custom_call.1} parent=1 // pred_fallthru
      _
    %182 = vsyncpa [#allocation3], 1
    %183 = vsyncpa [#allocation6], 1
    %184 = vsyncpa [#allocation4], 1
    %185 = vsyncpa [#allocation10], 1

</llo_original>
